<compile_context>
chip_gen: v5e
topology: v5e:2x2
jax: 0.10.0
libtpu: 0.0.40
codegen_flags: <defaults>
</compile_context>

<pallas_src>
import jax
import jax.numpy as jnp
from jax.experimental import pallas as pl
from jax.experimental.pallas import tpu as pltpu


def _rambley_kernel(params_ref, x_ref, o_ref):
    # params_ref: SMEM (2,) float32 -> [coef, bias].  Compute in f32, cast on store.
    coef = params_ref[0]
    bias = params_ref[1]
    x = x_ref[...].astype(jnp.float32)
    o_ref[...] = (x * coef + bias).astype(o_ref.dtype)


def _run_slab(slab, params):
    """Elementwise kernel over a 2-D lane-dense slab of shape (rows, cols)."""
    rows, cols = slab.shape
    itemsize = slab.dtype.itemsize

    # ~2 MiB per block (double-buffered in+out ~= 8 MiB, safe on v5e/v6e/v7x),
    # but keep >= 2 grid steps when possible so v7x's two TCs both get work.
    target_rows = max(8, (2 * 1024 * 1024 // itemsize) // cols)  # multiple of 8
    if rows > 8:
        half = (((rows + 1) // 2) + 7) // 8 * 8   # cdiv(rows, 2) rounded up to x8
        block_rows = min(target_rows, half)       # multiple of 8, <= rows
    else:
        block_rows = rows                         # full-extent block

    grid = (pl.cdiv(rows, block_rows),)
    n_elems = rows * cols

    return pl.pallas_call(
        _rambley_kernel,
        out_shape=jax.ShapeDtypeStruct((rows, cols), slab.dtype),
        grid_spec=pl.GridSpec(
            grid=grid,
            in_specs=[
                pl.BlockSpec(memory_space=pltpu.MemorySpace.SMEM),    # [coef, bias]
                pl.BlockSpec((block_rows, cols), lambda i: (i, 0)),   # x tile
            ],
            out_specs=pl.BlockSpec((block_rows, cols), lambda i: (i, 0)),
        ),
        compiler_params=pltpu.CompilerParams(
            dimension_semantics=("parallel",),
            vmem_limit_bytes=32 * 1024 * 1024,
        ),
        cost_estimate=pl.CostEstimate(
            flops=2 * n_elems,
            transcendentals=0,
            bytes_accessed=2 * n_elems * itemsize,
        ),
    )(params, slab)


def rambley_forward(peso, peso_coef, taxa_fixa):
    """peso: float array of any shape. Returns peso * coef + bias."""
    orig_shape = peso.shape
    dtype = peso.dtype
    n = peso.size

    if n == 0:
        return peso

    # Parameters stay float32 (module holds f32 parameters); cast once in-kernel.
    params = jnp.stack(
        [jnp.asarray(peso_coef, jnp.float32), jnp.asarray(taxa_fixa, jnp.float32)]
    )

    flat = peso.reshape(-1)

    if n < 128:
        # Tiny input: single full-extent block (block dims equal array dims).
        out = _run_slab(flat.reshape(1, n), params)
        return out.reshape(orig_shape)

    # Lane-dense layout without any full-array padding: the bulk is a multiple
    # of 128 and is reshaped for free; only a <128-element tail (if any) is
    # processed outside the kernel.
    rem = n % 128
    main_n = n - rem
    cols = 512 if main_n % 512 == 0 else (256 if main_n % 256 == 0 else 128)
    rows = main_n // cols

    main = flat if rem == 0 else flat[:main_n]
    main_out = _run_slab(main.reshape(rows, cols), params)

    if rem == 0:
        return main_out.reshape(orig_shape)

    # <128-element tail: negligible, handled in plain XLA with f32 math.
    tail = flat[main_n:]
    tail_out = (tail.astype(jnp.float32) * params[0] + params[1]).astype(dtype)
    out = jnp.concatenate([main_out.reshape(-1), tail_out])
    return out.reshape(orig_shape)


if __name__ == "__main__":
    # Deterministic parameter init (matches module __init__ values).
    peso_coeficiente = jnp.float32(0.3333)
    taxa_fixa = jnp.float32(0.0)

    key = jax.random.PRNGKey(0)
    # Small NCHW-style input consistent with a generic forward.
    x = jax.random.normal(key, (2, 4, 16, 16), dtype=jnp.float32)

    out = rambley_forward(x, peso_coeficiente, taxa_fixa)
    out = jax.block_until_ready(out)

    # Reference check in plain JAX.
    ref = x * peso_coeficiente + taxa_fixa
    assert out.shape == x.shape
    assert jnp.allclose(out, ref, atol=1e-6), "mismatch vs reference"

    print("KERNEL_OK")
</pallas_src>

<mosaic_0001>
module attributes {stable_mosaic.version = 11 : i64} {
  func.func @_rambley_kernel(%arg0: i32, %arg1: memref<2xf32, #tpu.memory_space<smem>>, %arg2: memref<4x512xf32, #tpu.memory_space<vmem>>, %arg3: memref<4x512xf32, #tpu.memory_space<vmem>>) attributes {dimension_semantics = [#tpu.dimension_semantics<parallel>], iteration_bounds = array<i64: 1>, scalar_prefetch = 0 : i64, scratch_operands = 0 : i64, tpu.core_type = #tpu.core_type<tc>, window_params = [{transform_indices = @transform_0, window_bounds = array<i64: 2>}, {transform_indices = @transform_1, window_bounds = array<i64: 4, 512>}, {transform_indices = @transform_2, window_bounds = array<i64: 4, 512>}]} {
    %c0 = arith.constant 0 : index
    %0 = memref.load %arg1[%c0] : memref<2xf32, #tpu.memory_space<smem>>
    %c1 = arith.constant 1 : index
    %1 = memref.load %arg1[%c1] : memref<2xf32, #tpu.memory_space<smem>>
    %c0_0 = arith.constant 0 : index
    %c0_1 = arith.constant 0 : index
    %2 = vector.load %arg2[%c0_0, %c0_1] : memref<4x512xf32, #tpu.memory_space<vmem>>, vector<4x512xf32>
    %3 = vector.broadcast %0 : f32 to vector<4x512xf32>
    %4 = arith.mulf %2, %3 : vector<4x512xf32>
    %5 = vector.broadcast %1 : f32 to vector<4x512xf32>
    %6 = arith.addf %4, %5 : vector<4x512xf32>
    %c0_2 = arith.constant 0 : index
    %c0_3 = arith.constant 0 : index
    %7 = vector.load %arg3[%c0_2, %c0_3] : memref<4x512xf32, #tpu.memory_space<vmem>>, vector<4x512xf32>
    tpu.vector_store %arg3[%c0_2, %c0_3], %6 {strides = array<i32>} : memref<4x512xf32, #tpu.memory_space<vmem>>, vector<4x512xf32>,
    return
  }
  func.func @transform_0(%arg0: i32) -> i32 {
    %c0_i32 = arith.constant 0 : i32
    %c0_i32_0 = arith.constant 0 : i32
    return %c0_i32 : i32
  }
  func.func @transform_1(%arg0: i32) -> (i32, i32) {
    %c0_i32 = arith.constant 0 : i32
    %c0_i32_0 = arith.constant 0 : i32
    return %arg0, %c0_i32 : i32, i32
  }
  func.func @transform_2(%arg0: i32) -> (i32, i32) {
    %c0_i32 = arith.constant 0 : i32
    %c0_i32_0 = arith.constant 0 : i32
    return %arg0, %c0_i32 : i32, i32
  }
}

</mosaic_0001>

<llo_original>
// kernel: tpu_custom_call.1
$region0: #{tpu_custom_call.1}
  #allocation0 [shape = 'u32[]', space=smem, size = 0x4, offset = 0x4, fixed_abs, tag = 'smem constant byte address 0x4 - core index']
  #allocation1 [shape = 'u32[72,128]{1,0:T(1,128)}', space=vmem, size = 0x9000, scoped, tag = 'internal scratch']
  %s0 = inlined_call_operand.hbm [shape: f32[2], index: 0, kind: input, shape index: {}]
  %s1 = inlined_call_operand.hbm [shape: f32[4,512], index: 1, kind: input, shape index: {}]
  %s2 = inlined_call_operand.hbm [shape: f32[4,512], index: 2, kind: output, shape index: {}]
  %s3 = sld [smem:[#allocation0]]
  $region26: #{tpu_custom_call.1} parent=0
    _
  %s5 = ssub.s32 1, %s3
  %s6 = scalar_select 0, %s5, %s3
  $region1: #{tpu_custom_call.1} parent=0
    #allocation2 [shape = 'u8[512]{0}', space=smem, size = 0x200, scoped, tag = 'input window, operand 0, single buffered']
    #allocation3 [shape = 's32[1]{0}', space=sflag, size = 0x4, scoped, tag = 'scoped memory for tpu_custom_call.1']
    #allocation4 [shape = 's32[1]{0}', space=sflag, size = 0x4, scoped, tag = 'scoped memory for tpu_custom_call.1']
    #allocation5 [shape = 's32[1]{0}', space=sflag, size = 0x4, scoped, tag = 'scoped memory for tpu_custom_call.1']
    #allocation6 [shape = 'u8[8192]{0}', space=vmem, size = 0x2000, scoped, tag = 'input window, operand 1, single buffered']
    #allocation7 [shape = 'u8[8192]{0}', space=vmem, size = 0x2000, scoped, tag = 'output window, operand 0, single buffered']
    %7 = vsyncpa [#allocation5], 0
    %8 = vsyncpa [#allocation3], 0
    %9 = vsyncpa [#allocation4], 0
    // Predicated region
    $region2: #{tpu_custom_call.1} parent=1 // pred_check
      _
    $region3: #{tpu_custom_call.1} parent=1 // pred_check_branch
      %11 = sbr.rel (0) target = $region5
    $region4: #{tpu_custom_call.1} parent=1 // pred_region
      %13 = vsyncadd [#allocation5], 0
      %s15 = sshll.u32 %s0, 4
      %s16 = int_to_ptr.hbm [resolvable:$true] %s15
      %18 = dma.hbm_to_smem %s16, 16, [#allocation2], [#allocation5]
    $region5: #{tpu_custom_call.1} parent=1 // pred_fallthru
      _
    // Predicated region
    $region6: #{tpu_custom_call.1} parent=1 // pred_check
      _
    $region7: #{tpu_custom_call.1} parent=1 // pred_check_branch
      %20 = sbr.rel (0) target = $region9
    $region8: #{tpu_custom_call.1} parent=1 // pred_region
      %22 = vsyncadd [#allocation3], 0
      %s24 = sshll.u32 %s1, 4
      %s25 = int_to_ptr.hbm [resolvable:$true] %s24
      %s26 = sshll.u32 [#allocation6], 4
      %s27 = int_to_ptr.vmem [resolvable:$true] %s26
      %29 = dma.hbm_to_vmem [thread:$0]  %s25, 256, %s27, [#allocation3]
    $region9: #{tpu_custom_call.1} parent=1 // pred_fallthru
      _
    // Predicated region
    $region10: #{tpu_custom_call.1} parent=1 // pred_check
      _
    $region11: #{tpu_custom_call.1} parent=1 // pred_check_branch
      %31 = sbr.rel (0) target = $region13
    $region12: #{tpu_custom_call.1} parent=1 // pred_region
      %33 = dma.done [#allocation5], 16
    $region13: #{tpu_custom_call.1} parent=1 // pred_fallthru
      _
    // Predicated region
    $region14: #{tpu_custom_call.1} parent=1 // pred_check
      _
    $region15: #{tpu_custom_call.1} parent=1 // pred_check_branch
      %35 = sbr.rel (0) target = $region17
    $region16: #{tpu_custom_call.1} parent=1 // pred_region
      %37 = dma.done [#allocation3], 256
    $region17: #{tpu_custom_call.1} parent=1 // pred_fallthru
      _
    %38 = sfence
    %s39 = sld [smem:[#allocation2]]
    %s40 = sld [smem:[#allocation2 + $0x1]]
    %v41 = vld [vmem:[#allocation6] sm:$0xff]
    %v42 = vld [vmem:[#allocation6 + $0x8] sm:$0xff]
    %v43 = vstv %s39
    %v44 = vmul.f32 %v41, %v43
    %v45 = vmul.f32 %v42, %v43
    %v46 = vstv %s40
    %v47 = vadd.f32 %v44, %v46
    %v48 = vadd.f32 %v45, %v46
    %49 = vst [vmem:[#allocation7] sm:$0xff] %v47
    %50 = vst [vmem:[#allocation7 + $0x8] sm:$0xff] %v48
    // Predicated region
    $region18: #{tpu_custom_call.1} parent=1 // pred_check
      _
    $region19: #{tpu_custom_call.1} parent=1 // pred_check_branch
      %52 = sbr.rel (0) target = $region21
    $region20: #{tpu_custom_call.1} parent=1 // pred_region
      %54 = vsyncadd [#allocation4], 0
      %s56 = sshll.u32 [#allocation7], 4
      %s57 = int_to_ptr.vmem [resolvable:$true] %s56
      %s58 = sshll.u32 %s2, 4
      %s59 = int_to_ptr.hbm [resolvable:$true] %s58
      %61 = dma.vmem_to_hbm [thread:$0]  %s57, 256, %s59, [#allocation4]
    $region21: #{tpu_custom_call.1} parent=1 // pred_fallthru
      _
    // Predicated region
    $region22: #{tpu_custom_call.1} parent=1 // pred_check
      _
    $region23: #{tpu_custom_call.1} parent=1 // pred_check_branch
      %63 = sbr.rel (0) target = $region25
    $region24: #{tpu_custom_call.1} parent=1 // pred_region
      %65 = dma.done [#allocation4], 256
    $region25: #{tpu_custom_call.1} parent=1 // pred_fallthru
      _
    %66 = vsyncpa [#allocation3], 1
    %67 = vsyncpa [#allocation4], 1
    %68 = vsyncpa [#allocation5], 1

</llo_original>
